<compile_context>
chip_gen: v7x
topology: tpu7x:2x2x1
jax: 0.10.0
libtpu: 0.0.40
codegen_flags: <defaults>
</compile_context>

<pallas_src>
import jax
import jax.numpy as jnp
from jax.experimental import pallas as pl
from jax.experimental.pallas import tpu as pltpu


def _make_sdpa_kernel(temperature, attn_type, use_mask, write_attn, matmul_dtype):
    inv_t = 1.0 / float(temperature)

    def kernel(*refs):
        idx = 0
        q_ref = refs[idx]; idx += 1          # (tb, tq, D)
        k_ref = refs[idx]; idx += 1          # (tb, Lk, D)
        v_ref = refs[idx]; idx += 1          # (tb, Lk, Dv)
        mask_ref = None
        if use_mask:
            mask_ref = refs[idx]; idx += 1   # (tb, tq, Lk)
        out_ref = refs[idx]; idx += 1        # (tb, tq, Dv)
        attn_ref = refs[idx] if write_attn else None  # (tb, tq, Lk)

        # Fold 1/temperature into the small (tq, D) q tile instead of scaling
        # the (tq, Lk) scores tensor.
        q = q_ref[...].astype(jnp.float32) * jnp.float32(inv_t)
        k = k_ref[...]
        v = v_ref[...]

        if matmul_dtype is not None:
            qm = q.astype(matmul_dtype)
            km = k.astype(matmul_dtype)
        else:
            qm = q.astype(k.dtype)
            km = k

        # scores = (q / T) @ k^T ; contract last dims (batched MXU matmul,
        # f32 accumulation, no explicit k transpose through the XLU).
        scores = jnp.einsum("bqd,bkd->bqk", qm, km,
                            preferred_element_type=jnp.float32)

        if use_mask:
            scores = jnp.where(mask_ref[...] != 0, jnp.float32(-1000000.0), scores)

        if attn_type == "softmax":
            m = jnp.max(scores, axis=-1, keepdims=True)
            e = jnp.exp(scores - m)
            denom = jnp.sum(e, axis=-1, keepdims=True)
            if write_attn:
                attn = e / denom                      # exact rows-sum-to-1 for the caller
            else:
                attn = e * pl.reciprocal(denom, approx=True)   # EUP slot, ~free
        else:  # 'sigmoid'
            attn = jax.nn.sigmoid(scores)

        # Dropout: identity in eval mode (see TODO at top of file).

        p_dtype = matmul_dtype if matmul_dtype is not None else v.dtype
        out = jnp.einsum("bqk,bkd->bqd", attn.astype(p_dtype), v.astype(p_dtype),
                         preferred_element_type=jnp.float32)

        out_ref[...] = out.astype(out_ref.dtype)
        if write_attn:
            attn_ref[...] = attn.astype(attn_ref.dtype)

    return kernel


def _largest_divisor_leq(n, cap):
    cap = max(1, min(n, cap))
    for d in range(cap, 0, -1):
        if n % d == 0:
            return d
    return 1


def _pick_q_tile(Lq, target, align):
    if Lq <= target:
        return Lq
    t = (target // align) * align
    while t >= align:
        if Lq % t == 0:
            return t
        t -= align
    # No aligned divisor <= target: use an aligned tile and a cdiv grid
    # (tail reads are padded, tail writes are masked; rows are independent).
    return max(align, (target // align) * align)


def _vmem_info():
    """(physical VMEM bytes, tile-selection budget). Conservative 64 MiB default."""
    cap = 64 * 1024 * 1024
    try:
        info = pltpu.get_tpu_info()
        cap = int(getattr(info, "vmem_capacity_bytes", cap)) or cap
    except Exception:
        pass
    return cap, (cap * 3) // 4   # ~48 MiB on v7x, ~96 MiB on v5e/v6e


def scaled_dot_product_attention(q, k, v, attn_mask=None, *,
                                 temperature, attn_type="softmax",
                                 return_attn=True, attn_dtype=jnp.float32,
                                 matmul_dtype=None,
                                 block_q=None, block_b=None):
    """Pallas TPU implementation of ScaledDotProductAttention.forward.

    q: (B, Lq, D), k: (B, Lk, D), v: (B, Lk, Dv).
    attn_mask: optional (B, Lq, Lk), nonzero == masked.
    Returns (output, attn) if return_attn else (output, None).
    """
    B, Lq, D = q.shape
    _, Lk, Dk = k.shape
    _, _, Dv = v.shape
    assert Dk == D and k.shape[0] == B and v.shape[0] == B and v.shape[1] == Lk

    use_mask = attn_mask is not None
    mask_itemsize = 0
    if use_mask:
        assert attn_mask.shape == (B, Lq, Lk)
        # Keep the caller's mask dtype: a wrapper-side int32->int8 cast is a
        # separate un-hidden XLA op that *adds* HBM traffic for one-shot masks.
        if attn_mask.dtype == jnp.bool_:
            attn_mask = attn_mask.astype(jnp.int8)   # same byte width
        mask_itemsize = attn_mask.dtype.itemsize

    itemsize = q.dtype.itemsize
    attn_itemsize = jnp.dtype(attn_dtype).itemsize
    vmem_cap, vmem_budget = _vmem_info()

    # Sub-32-bit masks pack along sublanes: keep partial q tiles 32-aligned then.
    q_align = 32 if (use_mask and mask_itemsize == 1) else 8

    # ---- tile selection ------------------------------------------------------
    tq = block_q if block_q is not None else _pick_q_tile(Lq, 256, q_align)
    if block_b is not None:
        tb = block_b
    else:
        # Present >= ~512 sublane rows per grid step to the MXU / DMA engines
        # (amortizes the ~0.35us per-step overhead, lane/sublane-dense traffic).
        tb = _largest_divisor_leq(B, max(1, 512 // max(tq, 1)))

    def footprint(tb_, tq_):
        f = 2 * tb_ * tq_ * D * itemsize            # q (double-buffered)
        f += 2 * tb_ * Lk * D * itemsize            # k
        f += 2 * tb_ * Lk * Dv * itemsize           # v
        f += 2 * tb_ * tq_ * Dv * itemsize          # out
        if use_mask:
            f += 2 * tb_ * tq_ * Lk * mask_itemsize
        if return_attn:
            f += 2 * tb_ * tq_ * Lk * attn_itemsize
        f += 3 * tb_ * tq_ * Lk * 4                 # live f32 scores/exp/attn
        return f

    # VMEM-aware shrink: tq first, then tb.
    while footprint(tb, tq) > vmem_budget and tq > q_align:
        new_tq = max(q_align, ((tq // 2) // q_align) * q_align)
        if new_tq == tq:
            break
        tq = new_tq
    while footprint(tb, tq) > vmem_budget and tb > 1:
        new_tb = _largest_divisor_leq(B, max(1, tb // 2))
        if new_tb == tb:
            break
        tb = new_tb

    # Guarantee >= 2 grid steps along a parallel axis so both v7x TCs get work.
    if pl.cdiv(B, tb) * pl.cdiv(Lq, tq) < 2:
        if B > 1:
            tb = _largest_divisor_leq(B, max(1, (B + 1) // 2))
        elif Lq > q_align:
            tq = max(q_align, -(-((Lq + 1) // 2) // q_align) * q_align)

    grid = (pl.cdiv(B, tb), pl.cdiv(Lq, tq))

    # ---- specs ---------------------------------------------------------------
    in_specs = [
        pl.BlockSpec((tb, tq, D),  lambda b, i: (b, i, 0)),
        pl.BlockSpec((tb, Lk, D),  lambda b, i: (b, 0, 0)),   # reused across Lq tiles
        pl.BlockSpec((tb, Lk, Dv), lambda b, i: (b, 0, 0)),   # reused across Lq tiles
    ]
    inputs = [q, k, v]
    if use_mask:
        in_specs.append(pl.BlockSpec((tb, tq, Lk), lambda b, i: (b, i, 0)))
        inputs.append(attn_mask)

    out_spec_o = pl.BlockSpec((tb, tq, Dv), lambda b, i: (b, i, 0))
    if return_attn:
        out_shape = (jax.ShapeDtypeStruct((B, Lq, Dv), q.dtype),
                     jax.ShapeDtypeStruct((B, Lq, Lk), attn_dtype))
        out_specs = [out_spec_o,
                     pl.BlockSpec((tb, tq, Lk), lambda b, i: (b, i, 0))]
    else:
        out_shape = jax.ShapeDtypeStruct((B, Lq, Dv), q.dtype)
        out_specs = out_spec_o

    vmem_limit = int(min((vmem_cap * 9) // 10,
                         max(32 * 1024 * 1024, 2 * footprint(tb, tq))))

    kernel = _make_sdpa_kernel(float(temperature), attn_type, use_mask,
                               return_attn, matmul_dtype)

    result = pl.pallas_call(
        kernel,
        out_shape=out_shape,
        grid_spec=pltpu.PrefetchScalarGridSpec(
            num_scalar_prefetch=0,
            grid=grid,
            in_specs=in_specs,
            out_specs=out_specs,
        ),
        compiler_params=pltpu.CompilerParams(
            dimension_semantics=("parallel", "parallel"),
            vmem_limit_bytes=vmem_limit,
        ),
    )(*inputs)

    if return_attn:
        return result[0], result[1]
    return result, None


def _reference(q, k, v, attn_mask, temperature, attn_type="softmax"):
    scores = jnp.einsum("bqd,bkd->bqk", q, k) / temperature
    if attn_mask is not None:
        scores = jnp.where(attn_mask != 0, -1000000.0, scores)
    if attn_type == "softmax":
        attn = jax.nn.softmax(scores, axis=2)
    else:
        attn = jax.nn.sigmoid(scores)
    out = jnp.einsum("bqk,bkd->bqd", attn, v)
    return out, attn


if __name__ == "__main__":
    # Small, module-consistent shapes: batch=2, seq_q=8, seq_k=16, hidden=32.
    B, Lq, Lk, D, Dv = 2, 8, 16, 32, 32
    temperature = float(D) ** 0.5  # typical: sqrt(d_k)

    key = jax.random.PRNGKey(0)
    kq, kk, kv, km = jax.random.split(key, 4)
    q = jax.random.normal(kq, (B, Lq, D), dtype=jnp.float32)
    k = jax.random.normal(kk, (B, Lk, D), dtype=jnp.float32)
    v = jax.random.normal(kv, (B, Lk, Dv), dtype=jnp.float32)
    # Deterministic mask (nonzero = masked), ~25% masked.
    attn_mask = (jax.random.uniform(km, (B, Lq, Lk)) < 0.25).astype(jnp.int32)

    # Masked softmax path.
    out, attn = scaled_dot_product_attention(
        q, k, v, attn_mask, temperature=temperature, attn_type="softmax")
    out, attn = jax.block_until_ready((out, attn))
    ref_out, ref_attn = _reference(q, k, v, attn_mask, temperature)
    assert jnp.allclose(out, ref_out, atol=2e-3, rtol=2e-3), "masked output mismatch"
    assert jnp.allclose(attn, ref_attn, atol=1e-3, rtol=1e-3), "masked attn mismatch"

    # Unmasked path (no mask DMA at all).
    out2, attn2 = scaled_dot_product_attention(
        q, k, v, None, temperature=temperature, attn_type="softmax")
    out2, attn2 = jax.block_until_ready((out2, attn2))
    ref_out2, ref_attn2 = _reference(q, k, v, None, temperature)
    assert jnp.allclose(out2, ref_out2, atol=2e-3, rtol=2e-3), "output mismatch"
    assert jnp.allclose(attn2, ref_attn2, atol=1e-3, rtol=1e-3), "attn mismatch"

    # Output-only path (skips the attn HBM writeback, uses approx reciprocal).
    out3, _ = scaled_dot_product_attention(
        q, k, v, attn_mask, temperature=temperature, return_attn=False)
    out3 = jax.block_until_ready(out3)
    assert jnp.allclose(out3, ref_out, atol=2e-3, rtol=2e-3), "out-only mismatch"

    print("KERNEL_OK")
</pallas_src>

<mosaic_0001>
module attributes {stable_mosaic.version = 11 : i64} {
  func.func @kernel(%arg0: i32, %arg1: i32, %arg2: memref<1x8x32xf32, #tpu.memory_space<vmem>>, %arg3: memref<1x16x32xf32, #tpu.memory_space<vmem>>, %arg4: memref<1x16x32xf32, #tpu.memory_space<vmem>>, %arg5: memref<1x8x16xi32, #tpu.memory_space<vmem>>, %arg6: memref<1x8x32xf32, #tpu.memory_space<vmem>>, %arg7: memref<1x8x16xf32, #tpu.memory_space<vmem>>) attributes {dimension_semantics = [#tpu.dimension_semantics<parallel>, #tpu.dimension_semantics<parallel>], iteration_bounds = array<i64: 2, 1>, scalar_prefetch = 0 : i64, scratch_operands = 0 : i64, tpu.core_type = #tpu.core_type<tc>, window_params = [{transform_indices = @transform_0, window_bounds = array<i64: 1, 8, 32>}, {transform_indices = @transform_1, window_bounds = array<i64: 1, 16, 32>}, {transform_indices = @transform_2, window_bounds = array<i64: 1, 16, 32>}, {transform_indices = @transform_3, window_bounds = array<i64: 1, 8, 16>}, {transform_indices = @transform_4, window_bounds = array<i64: 1, 8, 32>}, {transform_indices = @transform_5, window_bounds = array<i64: 1, 8, 16>}]} {
    %c0 = arith.constant 0 : index
    %c0_0 = arith.constant 0 : index
    %c0_1 = arith.constant 0 : index
    %0 = vector.load %arg2[%c0, %c0_0, %c0_1] : memref<1x8x32xf32, #tpu.memory_space<vmem>>, vector<1x8x32xf32>
    %cst = arith.constant 0.176776692 : f32
    %1 = vector.broadcast %cst : f32 to vector<1x8x32xf32>
    %2 = arith.mulf %0, %1 : vector<1x8x32xf32>
    %c0_2 = arith.constant 0 : index
    %c0_3 = arith.constant 0 : index
    %c0_4 = arith.constant 0 : index
    %3 = vector.load %arg3[%c0_2, %c0_3, %c0_4] : memref<1x16x32xf32, #tpu.memory_space<vmem>>, vector<1x16x32xf32>
    %c0_5 = arith.constant 0 : index
    %c0_6 = arith.constant 0 : index
    %c0_7 = arith.constant 0 : index
    %4 = vector.load %arg4[%c0_5, %c0_6, %c0_7] : memref<1x16x32xf32, #tpu.memory_space<vmem>>, vector<1x16x32xf32>
    "tpu.trace_start"() <{level = 10 : i32, message = "bqd,bkd->bqk"}> : () -> ()
    %cst_8 = arith.constant dense<0.000000e+00> : vector<1x8x16xf32>
    %5 = tpu.matmul %2, %3, %cst_8 {dimension_numbers = #tpu.dot_dimension_numbers<[2], [2], [1], [1], [0, 0, 0, 1, 1, 1], [0], [0]>} : vector<1x8x32xf32>, vector<1x16x32xf32>, vector<1x8x16xf32> -> vector<1x8x16xf32>
    "tpu.trace_stop"() : () -> ()
    %c0_9 = arith.constant 0 : index
    %c0_10 = arith.constant 0 : index
    %c0_11 = arith.constant 0 : index
    %6 = vector.load %arg5[%c0_9, %c0_10, %c0_11] : memref<1x8x16xi32, #tpu.memory_space<vmem>>, vector<1x8x16xi32>
    %c0_i32 = arith.constant 0 : i32
    %7 = vector.broadcast %c0_i32 : i32 to vector<1x8x16xi32>
    %8 = arith.cmpi ne, %6, %7 : vector<1x8x16xi32>
    %cst_12 = arith.constant -1.000000e+06 : f32
    %9 = vector.broadcast %cst_12 : f32 to vector<1x8x16xf32>
    %10 = arith.select %8, %9, %5 : vector<1x8x16xi1>, vector<1x8x16xf32>
    %cst_13 = arith.constant dense<0xFF800000> : vector<1x8xf32>
    %11 = vector.multi_reduction <maximumf>, %10, %cst_13 [2] : vector<1x8x16xf32> to vector<1x8xf32>
    %12 = vector.shape_cast %11 : vector<1x8xf32> to vector<1x8x1xf32>
    %13 = vector.broadcast %12 : vector<1x8x1xf32> to vector<1x8x16xf32>
    %14 = arith.subf %10, %13 : vector<1x8x16xf32>
    %15 = math.exp %14 : vector<1x8x16xf32>
    %cst_14 = arith.constant dense<0.000000e+00> : vector<1x8xf32>
    %16 = vector.multi_reduction <add>, %15, %cst_14 [2] : vector<1x8x16xf32> to vector<1x8xf32>
    %17 = vector.shape_cast %16 : vector<1x8xf32> to vector<1x8x1xf32>
    %18 = vector.broadcast %17 : vector<1x8x1xf32> to vector<1x8x16xf32>
    %19 = arith.divf %15, %18 : vector<1x8x16xf32>
    "tpu.trace_start"() <{level = 10 : i32, message = "bqk,bkd->bqd"}> : () -> ()
    %cst_15 = arith.constant dense<0.000000e+00> : vector<1x8x32xf32>
    %20 = tpu.matmul %19, %4, %cst_15 {dimension_numbers = #tpu.dot_dimension_numbers<[2], [1], [1], [2], [0, 0, 0, 1, 1, 2], [0], [0]>} : vector<1x8x16xf32>, vector<1x16x32xf32>, vector<1x8x32xf32> -> vector<1x8x32xf32>
    "tpu.trace_stop"() : () -> ()
    %c0_16 = arith.constant 0 : index
    %c0_17 = arith.constant 0 : index
    %c0_18 = arith.constant 0 : index
    %21 = vector.load %arg6[%c0_16, %c0_17, %c0_18] : memref<1x8x32xf32, #tpu.memory_space<vmem>>, vector<1x8x32xf32>
    tpu.vector_store %arg6[%c0_16, %c0_17, %c0_18], %20 {strides = array<i32>} : memref<1x8x32xf32, #tpu.memory_space<vmem>>, vector<1x8x32xf32>,
    %c0_19 = arith.constant 0 : index
    %c0_20 = arith.constant 0 : index
    %c0_21 = arith.constant 0 : index
    %22 = vector.load %arg7[%c0_19, %c0_20, %c0_21] : memref<1x8x16xf32, #tpu.memory_space<vmem>>, vector<1x8x16xf32>
    tpu.vector_store %arg7[%c0_19, %c0_20, %c0_21], %19 {strides = array<i32>} : memref<1x8x16xf32, #tpu.memory_space<vmem>>, vector<1x8x16xf32>,
    return
  }
  func.func @transform_0(%arg0: i32, %arg1: i32) -> (i32, i32, i32) {
    %c0_i32 = arith.constant 0 : i32
    %c0_i32_0 = arith.constant 0 : i32
    return %arg0, %arg1, %c0_i32 : i32, i32, i32
  }
  func.func @transform_1(%arg0: i32, %arg1: i32) -> (i32, i32, i32) {
    %c0_i32 = arith.constant 0 : i32
    %c0_i32_0 = arith.constant 0 : i32
    %c0_i32_1 = arith.constant 0 : i32
    return %arg0, %c0_i32, %c0_i32_0 : i32, i32, i32
  }
  func.func @transform_2(%arg0: i32, %arg1: i32) -> (i32, i32, i32) {
    %c0_i32 = arith.constant 0 : i32
    %c0_i32_0 = arith.constant 0 : i32
    %c0_i32_1 = arith.constant 0 : i32
    return %arg0, %c0_i32, %c0_i32_0 : i32, i32, i32
  }
  func.func @transform_3(%arg0: i32, %arg1: i32) -> (i32, i32, i32) {
    %c0_i32 = arith.constant 0 : i32
    %c0_i32_0 = arith.constant 0 : i32
    return %arg0, %arg1, %c0_i32 : i32, i32, i32
  }
  func.func @transform_4(%arg0: i32, %arg1: i32) -> (i32, i32, i32) {
    %c0_i32 = arith.constant 0 : i32
    %c0_i32_0 = arith.constant 0 : i32
    return %arg0, %arg1, %c0_i32 : i32, i32, i32
  }
  func.func @transform_5(%arg0: i32, %arg1: i32) -> (i32, i32, i32) {
    %c0_i32 = arith.constant 0 : i32
    %c0_i32_0 = arith.constant 0 : i32
    return %arg0, %arg1, %c0_i32 : i32, i32, i32
  }
}

</mosaic_0001>

<llo_original>
// kernel: tpu_custom_call.1
$region0: #{tpu_custom_call.1}
  #allocation0 [shape = 'u32[]', space=smem, size = 0x4, offset = 0x4, fixed_abs, tag = 'smem constant byte address 0x4 - core index']
  #allocation1 [shape = 'u32[144,128]{1,0:T(1,128)}', space=vmem, size = 0x12000, scoped, tag = 'internal scratch']
  %s0 = inlined_call_operand.hbm [shape: f32[2,8,32], index: 0, kind: input, shape index: {}]
  %s1 = inlined_call_operand.hbm [shape: f32[2,16,32], index: 1, kind: input, shape index: {}]
  %s2 = inlined_call_operand.hbm [shape: f32[2,16,32], index: 2, kind: input, shape index: {}]
  %s3 = inlined_call_operand.hbm [shape: s32[2,8,16], index: 3, kind: input, shape index: {}]
  %s4 = inlined_call_operand.hbm [shape: f32[2,8,32], index: 4, kind: output, shape index: {0}]
  %s5 = inlined_call_operand.hbm [shape: f32[2,8,16], index: 5, kind: output, shape index: {1}]
  %6 = xla_tuple %s4, %s5
  %s7 = sld [smem:[#allocation0]]
  $region73: #{tpu_custom_call.1} parent=0
    _
  %s9 = ssub.s32 1, %s7
  %s10 = scalar_select 0, %s9, %s7
  $region1: #{tpu_custom_call.1} parent=0
    #allocation2 [shape = 'u8[8192]{0}', space=vmem, size = 0x2000, scoped, tag = 'input window, operand 0']
    #allocation3 [shape = 's32[2]{0}', space=sflag, size = 0x8, scoped, tag = 'scoped memory for tpu_custom_call.1']
    #allocation4 [shape = 's32[2]{0}', space=sflag, size = 0x8, scoped, tag = 'scoped memory for tpu_custom_call.1']
    #allocation5 [shape = 'u8[16384]{0}', space=vmem, size = 0x4000, scoped, tag = 'input window, operand 1']
    #allocation6 [shape = 's32[2]{0}', space=sflag, size = 0x8, scoped, tag = 'scoped memory for tpu_custom_call.1']
    #allocation7 [shape = 'u8[16384]{0}', space=vmem, size = 0x4000, scoped, tag = 'input window, operand 2']
    #allocation8 [shape = 'u8[8192]{0}', space=vmem, size = 0x2000, scoped, tag = 'input window, operand 3']
    #allocation9 [shape = 's32[2]{0}', space=sflag, size = 0x8, scoped, tag = 'scoped memory for tpu_custom_call.1']
    #allocation10 [shape = 'u8[8192]{0}', space=vmem, size = 0x2000, scoped, tag = 'output window, operand 0']
    #allocation11 [shape = 'u8[8192]{0}', space=vmem, size = 0x2000, scoped, tag = 'output window, operand 1']
    #allocation12 [shape = 's32[2]{0}', space=sflag, size = 0x8, scoped, tag = 'scoped memory for tpu_custom_call.1']
    %11 = vsyncpa [#allocation3], 0
    %s12 = scalar_lea.sflag [#allocation3], 1
    %13 = vsyncpa %s12, 0
    %14 = vsyncpa [#allocation6], 0
    %s15 = scalar_lea.sflag [#allocation6], 1
    %16 = vsyncpa %s15, 0
    %17 = vsyncpa [#allocation9], 0
    %s18 = scalar_lea.sflag [#allocation9], 1
    %19 = vsyncpa %s18, 0
    %20 = vsyncpa [#allocation4], 0
    %s21 = scalar_lea.sflag [#allocation4], 1
    %22 = vsyncpa %s21, 0
    %23 = vsyncpa [#allocation12], 0
    %s24 = scalar_lea.sflag [#allocation12], 1
    %25 = vsyncpa %s24, 0
    loop: start=0, step=1, limit=4
    $region2: #{tpu_custom_call.1} parent=1 // loop_pre_header
      _
    $region3: #{tpu_custom_call.1} parent=1 // loop_header
      %s27 = sphi 0, %s31
      %p28 = scmp.ge.s32.totalorder %s27, 4
      %s34 = sphi 0, %s46
      %s35 = sphi 0, %s42
      %s36 = sphi 0, %s34
      %s37 = sphi 0, %s35
      %s38 = sphi 0, %s36
      %s39 = sphi 0, %s37
      %s51 = sphi 0, %s53
      %s54 = sphi 0, %s51
      %s55 = sphi 0, %s54
      %s71 = sphi 0, %s55
      %s77 = sphi 0, %s79
      %s80 = sphi 0, %s77
      %s81 = sphi 0, %s80
      %s97 = sphi 0, %s81
      %s103 = sphi 0, %s105
      %s106 = sphi 0, %s103
      %s107 = sphi 0, %s106
      %s123 = sphi 0, %s107
      %s131 = sphi 0, %s133
      %s134 = sphi 0, %s131
      %s135 = sphi 0, %s134
      %s151 = sphi 0, %s135
      %s159 = sphi 0, %s161
      %s162 = sphi 0, %s159
      %s163 = sphi 0, %s162
      %s179 = sphi 0, %s163
      %s187 = sphi 0, %s189
      %s190 = sphi 0, %s187
      %s191 = sphi 0, %s190
      %s207 = sphi 0, %s191
    $region4: #{tpu_custom_call.1} parent=1 // loop_header_branch
      %30 = sbr.rel (%p28) target = $region8
    $region5: #{tpu_custom_call.1} parent=1 // loop_body
      %s32 = ssub.s32 %s27, 1
      %s33 = ssub.s32 %s27, 2
      %s40 = sadd.s32 1, %s35
      %p41 = scmp.ge.s32.totalorder %s40, 1
      %s42 = scalar_select %p41, 0, %s40
      %s43 = sadd.s32 1, %s34
      %s44 = scalar_select %p41, %s43, %s34
      %p45 = scmp.ge.s32.totalorder %s44, 2
      %s46 = scalar_select %p45, 0, %s44
      %s47 = ssub.s32 %s34, %s46
      %s48 = ssub.s32 %s35, %s42
      %s49 = sor.u32 %s47, %s48
      %p50 = scmp.eq.s32.totalorder %s49, 0
      %s52 = sadd.s32 %s51, 1
      %s53 = scalar_select %p50, %s51, %s52
      %p56 = pneg %p50
      %p57 = scmp.eq.s32.totalorder %s27, 1
      %p58 = por %p56, %p57
      %p59 = scmp.ne.s32.totalorder %s51, %s54
      %p60 = scmp.eq.s32.totalorder %s27, 0
      %p61 = por %p59, %p60
      %p62 = scmp.ne.s32.totalorder %s51, %s54
      %p63 = scmp.eq.s32.totalorder %s32, 1
      %p64 = por %p62, %p63
      %p65 = scmp.ne.s32.totalorder %s54, %s55
      %p66 = scmp.eq.s32.totalorder %s32, 0
      %p67 = por %p65, %p66
      %p68 = scmp.ne.s32.totalorder %s54, %s55
      %p69 = scmp.eq.s32.totalorder %s33, 1
      %p70 = por %p68, %p69
      %p72 = scmp.ne.s32.totalorder %s55, %s71
      %p73 = scmp.eq.s32.totalorder %s33, 0
      %p74 = por %p72, %p73
      %s75 = ssub.s32 %s34, %s46
      %p76 = scmp.eq.s32.totalorder %s75, 0
      %s78 = sadd.s32 %s77, 1
      %s79 = scalar_select %p76, %s77, %s78
      %p82 = pneg %p76
      %p83 = scmp.eq.s32.totalorder %s27, 1
      %p84 = por %p82, %p83
      %p85 = scmp.ne.s32.totalorder %s77, %s80
      %p86 = scmp.eq.s32.totalorder %s27, 0
      %p87 = por %p85, %p86
      %p88 = scmp.ne.s32.totalorder %s77, %s80
      %p89 = scmp.eq.s32.totalorder %s32, 1
      %p90 = por %p88, %p89
      %p91 = scmp.ne.s32.totalorder %s80, %s81
      %p92 = scmp.eq.s32.totalorder %s32, 0
      %p93 = por %p91, %p92
      %p94 = scmp.ne.s32.totalorder %s80, %s81
      %p95 = scmp.eq.s32.totalorder %s33, 1
      %p96 = por %p94, %p95
      %p98 = scmp.ne.s32.totalorder %s81, %s97
      %p99 = scmp.eq.s32.totalorder %s33, 0
      %p100 = por %p98, %p99
      %s101 = ssub.s32 %s34, %s46
      %p102 = scmp.eq.s32.totalorder %s101, 0
      %s104 = sadd.s32 %s103, 1
      %s105 = scalar_select %p102, %s103, %s104
      %p108 = pneg %p102
      %p109 = scmp.eq.s32.totalorder %s27, 1
      %p110 = por %p108, %p109
      %p111 = scmp.ne.s32.totalorder %s103, %s106
      %p112 = scmp.eq.s32.totalorder %s27, 0
      %p113 = por %p111, %p112
      %p114 = scmp.ne.s32.totalorder %s103, %s106
      %p115 = scmp.eq.s32.totalorder %s32, 1
      %p116 = por %p114, %p115
      %p117 = scmp.ne.s32.totalorder %s106, %s107
      %p118 = scmp.eq.s32.totalorder %s32, 0
      %p119 = por %p117, %p118
      %p120 = scmp.ne.s32.totalorder %s106, %s107
      %p121 = scmp.eq.s32.totalorder %s33, 1
      %p122 = por %p120, %p121
      %p124 = scmp.ne.s32.totalorder %s107, %s123
      %p125 = scmp.eq.s32.totalorder %s33, 0
      %p126 = por %p124, %p125
      %s127 = ssub.s32 %s34, %s46
      %s128 = ssub.s32 %s35, %s42
      %s129 = sor.u32 %s127, %s128
      %p130 = scmp.eq.s32.totalorder %s129, 0
      %s132 = sadd.s32 %s131, 1
      %s133 = scalar_select %p130, %s131, %s132
      %p136 = pneg %p130
      %p137 = scmp.eq.s32.totalorder %s27, 1
      %p138 = por %p136, %p137
      %p139 = scmp.ne.s32.totalorder %s131, %s134
      %p140 = scmp.eq.s32.totalorder %s27, 0
      %p141 = por %p139, %p140
      %p142 = scmp.ne.s32.totalorder %s131, %s134
      %p143 = scmp.eq.s32.totalorder %s32, 1
      %p144 = por %p142, %p143
      %p145 = scmp.ne.s32.totalorder %s134, %s135
      %p146 = scmp.eq.s32.totalorder %s32, 0
      %p147 = por %p145, %p146
      %p148 = scmp.ne.s32.totalorder %s134, %s135
      %p149 = scmp.eq.s32.totalorder %s33, 1
      %p150 = por %p148, %p149
      %p152 = scmp.ne.s32.totalorder %s135, %s151
      %p153 = scmp.eq.s32.totalorder %s33, 0
      %p154 = por %p152, %p153
      %s155 = ssub.s32 %s34, %s46
      %s156 = ssub.s32 %s35, %s42
      %s157 = sor.u32 %s155, %s156
      %p158 = scmp.eq.s32.totalorder %s157, 0
      %s160 = sadd.s32 %s159, 1
      %s161 = scalar_select %p158, %s159, %s160
      %p164 = pneg %p158
      %p165 = scmp.eq.s32.totalorder %s27, 1
      %p166 = por %p164, %p165
      %p167 = scmp.ne.s32.totalorder %s159, %s162
      %p168 = scmp.eq.s32.totalorder %s27, 0
      %p169 = por %p167, %p168
      %p170 = scmp.ne.s32.totalorder %s159, %s162
      %p171 = scmp.eq.s32.totalorder %s32, 1
      %p172 = por %p170, %p171
      %p173 = scmp.ne.s32.totalorder %s162, %s163
      %p174 = scmp.eq.s32.totalorder %s32, 0
      %p175 = por %p173, %p174
      %p176 = scmp.ne.s32.totalorder %s162, %s163
      %p177 = scmp.eq.s32.totalorder %s33, 1
      %p178 = por %p176, %p177
      %p180 = scmp.ne.s32.totalorder %s163, %s179
      %p181 = scmp.eq.s32.totalorder %s33, 0
      %p182 = por %p180, %p181
      %s183 = ssub.s32 %s34, %s46
      %s184 = ssub.s32 %s35, %s42
      %s185 = sor.u32 %s183, %s184
      %p186 = scmp.eq.s32.totalorder %s185, 0
      %s188 = sadd.s32 %s187, 1
      %s189 = scalar_select %p186, %s187, %s188
      %p192 = pneg %p186
      %p193 = scmp.eq.s32.totalorder %s27, 1
      %p194 = por %p192, %p193
      %p195 = scmp.ne.s32.totalorder %s187, %s190
      %p196 = scmp.eq.s32.totalorder %s27, 0
      %p197 = por %p195, %p196
      %p198 = scmp.ne.s32.totalorder %s187, %s190
      %p199 = scmp.eq.s32.totalorder %s32, 1
      %p200 = por %p198, %p199
      %p201 = scmp.ne.s32.totalorder %s190, %s191
      %p202 = scmp.eq.s32.totalorder %s32, 0
      %p203 = por %p201, %p202
      %p204 = scmp.ne.s32.totalorder %s190, %s191
      %p205 = scmp.eq.s32.totalorder %s33, 1
      %p206 = por %p204, %p205
      %p208 = scmp.ne.s32.totalorder %s191, %s207
      %p209 = scmp.eq.s32.totalorder %s33, 0
      %p210 = por %p208, %p209
      %p211 = scmp.le.s32.totalorder 1, %s27
      %p212 = scmp.lt.s32.totalorder %s27, 3
      %p213 = pnand %p211, %p212
      %p214 = pneg %p213
      // Predicated region
      $region9: #{tpu_custom_call.1} parent=5 // pred_check
        _
      $region10: #{tpu_custom_call.1} parent=5 // pred_check_branch
        %216 = sbr.rel (%p213) target = $region12
      $region11: #{tpu_custom_call.1} parent=5 // pred_region
        %s217 = ssub.s32 %s27, 1
      $region12: #{tpu_custom_call.1} parent=5 // pred_fallthru
        _
      %p218 = scmp.lt.s32.totalorder %s27, 2
      // Predicated region
      $region13: #{tpu_custom_call.1} parent=5 // pred_check
        %p219 = pneg %p218
      $region14: #{tpu_custom_call.1} parent=5 // pred_check_branch
        %221 = sbr.rel (%p219) target = $region16
      $region15: #{tpu_custom_call.1} parent=5 // pred_region
        // Predicated region
        $region17: #{tpu_custom_call.1} parent=15 // pred_check
          %p222 = pneg %p61
        $region18: #{tpu_custom_call.1} parent=15 // pred_check_branch
          %224 = sbr.rel (%p222) target = $region20
        $region19: #{tpu_custom_call.1} parent=15 // pred_region
          %s225 = sand.u32 %s51, 1
          %s226 = scalar_lea.sflag [#allocation3], %s225
          %s227 = sand.u32 %s51, 1
          %s228 = smul.addr %s227, 8
          %s229 = scalar_lea.vmem [#allocation2], %s228
          %s231 = ssub.s32 128, 128
          %232 = vsyncadd %s226, %s231
          %s233 = sadd.s32 %s35, %s34
          %s234 = smul.addr %s233, 128
          %s235 = scalar_lea.hbm %s0, %s234
          %s237 = sshll.u32 %s229, 4
          %s238 = int_to_ptr.vmem [resolvable:$true] %s237
          %240 = dma.hbm_to_vmem [thread:$0]  %s235, 128, %s238, %s226
        $region20: #{tpu_custom_call.1} parent=15 // pred_fallthru
          _
        // Predicated region
        $region21: #{tpu_custom_call.1} parent=15 // pred_check
          %p241 = pneg %p87
        $region22: #{tpu_custom_call.1} parent=15 // pred_check_branch
          %243 = sbr.rel (%p241) target = $region24
        $region23: #{tpu_custom_call.1} parent=15 // pred_region
          %s244 = sand.u32 %s27, 1
          %s245 = scalar_lea.sflag [#allocation6], %s244
          %s246 = sand.u32 %s77, 1
          %s247 = smul.addr %s246, 16
          %s248 = scalar_lea.vmem [#allocation5], %s247
          %s250 = ssub.s32 256, 256
          %251 = vsyncadd %s245, %s250
          %s252 = smul.addr %s34, 2
          %s253 = smul.addr %s252, 128
          %s254 = scalar_lea.hbm %s1, %s253
          %s255 = sshll.u32 %s248, 4
          %s256 = int_to_ptr.vmem [resolvable:$true] %s255
          %261 = dma.hbm_to_vmem [thread:$0]  %s254, 256, %s256, %s245, 128, 128, 8
        $region24: #{tpu_custom_call.1} parent=15 // pred_fallthru
          _
        // Predicated region
        $region25: #{tpu_custom_call.1} parent=15 // pred_check
          %p262 = pneg %p113
        $region26: #{tpu_custom_call.1} parent=15 // pred_check_branch
          %264 = sbr.rel (%p262) target = $region28
        $region27: #{tpu_custom_call.1} parent=15 // pred_region
          %s265 = sand.u32 %s27, 1
          %s266 = scalar_lea.sflag [#allocation6], %s265
          %s267 = sand.u32 %s103, 1
          %s268 = smul.addr %s267, 16
          %s269 = scalar_lea.vmem [#allocation7], %s268
          %s271 = ssub.s32 256, 256
          %272 = vsyncadd %s266, %s271
          %s273 = smul.addr %s34, 2
          %s274 = smul.addr %s273, 128
          %s275 = scalar_lea.hbm %s2, %s274
          %s276 = sshll.u32 %s269, 4
          %s277 = int_to_ptr.vmem [resolvable:$true] %s276
          %282 = dma.hbm_to_vmem [thread:$0]  %s275, 256, %s277, %s266, 128, 128, 8
        $region28: #{tpu_custom_call.1} parent=15 // pred_fallthru
          _
        // Predicated region
        $region29: #{tpu_custom_call.1} parent=15 // pred_check
          %p283 = pneg %p141
        $region30: #{tpu_custom_call.1} parent=15 // pred_check_branch
          %285 = sbr.rel (%p283) target = $region32
        $region31: #{tpu_custom_call.1} parent=15 // pred_region
          %s286 = sand.u32 %s131, 1
          %s287 = scalar_lea.sflag [#allocation9], %s286
          %s288 = sand.u32 %s131, 1
          %s289 = smul.addr %s288, 8
          %s290 = scalar_lea.vmem [#allocation8], %s289
          %s292 = ssub.s32 128, 128
          %293 = vsyncadd %s287, %s292
          %s294 = sadd.s32 %s35, %s34
          %s295 = smul.addr %s294, 128
          %s296 = scalar_lea.hbm %s3, %s295
          %s298 = sshll.u32 %s290, 4
          %s299 = int_to_ptr.vmem [resolvable:$true] %s298
          %301 = dma.hbm_to_vmem [thread:$0]  %s296, 128, %s299, %s287
        $region32: #{tpu_custom_call.1} parent=15 // pred_fallthru
          _
      $region16: #{tpu_custom_call.1} parent=5 // pred_fallthru
        _
      %p302 = scmp.le.s32.totalorder 1, %s27
      %p303 = scmp.lt.s32.totalorder %s27, 3
      %p304 = pnand %p302, %p303
      %p305 = pneg %p304
      // Predicated region
      $region33: #{tpu_custom_call.1} parent=5 // pred_check
        _
      $region34: #{tpu_custom_call.1} parent=5 // pred_check_branch
        %307 = sbr.rel (%p304) target = $region36
      $region35: #{tpu_custom_call.1} parent=5 // pred_region
        %s308 = ssub.s32 %s27, 1
        %s309 = sand.u32 %s54, 1
        %s310 = scalar_lea.sflag [#allocation3], %s309
        %s311 = sand.u32 %s54, 1
        %s312 = smul.addr %s311, 8
        %s313 = scalar_lea.vmem [#allocation2], %s312
        // Predicated region
        $region37: #{tpu_custom_call.1} parent=35 // pred_check
          %p314 = pneg %p67
        $region38: #{tpu_custom_call.1} parent=35 // pred_check_branch
          %316 = sbr.rel (%p314) target = $region40
        $region39: #{tpu_custom_call.1} parent=35 // pred_region
          %317 = dma.done %s310, 128
        $region40: #{tpu_custom_call.1} parent=35 // pred_fallthru
          _
        %s318 = sand.u32 %s32, 1
        %s319 = scalar_lea.sflag [#allocation6], %s318
        %s320 = sand.u32 %s80, 1
        %s321 = smul.addr %s320, 16
        %s322 = scalar_lea.vmem [#allocation5], %s321
        // Predicated region
        $region41: #{tpu_custom_call.1} parent=35 // pred_check
          %p323 = pneg %p93
        $region42: #{tpu_custom_call.1} parent=35 // pred_check_branch
          %325 = sbr.rel (%p323) target = $region44
        $region43: #{tpu_custom_call.1} parent=35 // pred_region
          %326 = dma.done %s319, 256
        $region44: #{tpu_custom_call.1} parent=35 // pred_fallthru
          _
        %s327 = sand.u32 %s32, 1
        %s328 = scalar_lea.sflag [#allocation6], %s327
        %s329 = sand.u32 %s106, 1
        %s330 = smul.addr %s329, 16
        %s331 = scalar_lea.vmem [#allocation7], %s330
        // Predicated region
        $region45: #{tpu_custom_call.1} parent=35 // pred_check
          %p332 = pneg %p119
        $region46: #{tpu_custom_call.1} parent=35 // pred_check_branch
          %334 = sbr.rel (%p332) target = $region48
        $region47: #{tpu_custom_call.1} parent=35 // pred_region
          %335 = dma.done %s328, 256
        $region48: #{tpu_custom_call.1} parent=35 // pred_fallthru
          _
        %s336 = sand.u32 %s134, 1
        %s337 = scalar_lea.sflag [#allocation9], %s336
        %s338 = sand.u32 %s134, 1
        %s339 = smul.addr %s338, 8
        %s340 = scalar_lea.vmem [#allocation8], %s339
        // Predicated region
        $region49: #{tpu_custom_call.1} parent=35 // pred_check
          %p341 = pneg %p147
        $region50: #{tpu_custom_call.1} parent=35 // pred_check_branch
          %343 = sbr.rel (%p341) target = $region52
        $region51: #{tpu_custom_call.1} parent=35 // pred_region
          %344 = dma.done %s337, 128
        $region52: #{tpu_custom_call.1} parent=35 // pred_fallthru
          _
        %s345 = sand.u32 %s54, 1
        %s346 = scalar_lea.sflag [#allocation3], %s345
        %s347 = sand.u32 %s54, 1
        %s348 = smul.addr %s347, 8
        %s349 = scalar_lea.vmem [#allocation2], %s348
        %p350 = pneg %p67
        %p351 = pneg %p64
        %s352 = sand.u32 %s32, 1
        %s353 = scalar_lea.sflag [#allocation6], %s352
        %s354 = sand.u32 %s80, 1
        %s355 = smul.addr %s354, 16
        %s356 = scalar_lea.vmem [#allocation5], %s355
        %p357 = pneg %p93
        %p358 = pneg %p90
        %s359 = sand.u32 %s32, 1
        %s360 = scalar_lea.sflag [#allocation6], %s359
        %s361 = sand.u32 %s106, 1
        %s362 = smul.addr %s361, 16
        %s363 = scalar_lea.vmem [#allocation7], %s362
        %p364 = pneg %p119
        %p365 = pneg %p116
        %s366 = sand.u32 %s134, 1
        %s367 = scalar_lea.sflag [#allocation9], %s366
        %s368 = sand.u32 %s134, 1
        %s369 = smul.addr %s368, 8
        %s370 = scalar_lea.vmem [#allocation8], %s369
        %p371 = pneg %p147
        %p372 = pneg %p144
        %p373 = pneg %p175
        %p374 = pneg %p172
        %s375 = sand.u32 %s162, 1
        %s376 = scalar_lea.sflag [#allocation4], %s375
        %s377 = sand.u32 %s162, 1
        %s378 = smul.addr %s377, 8
        %s379 = scalar_lea.vmem [#allocation10], %s378
        %p380 = pneg %p203
        %p381 = pneg %p200
        %s382 = sand.u32 %s190, 1
        %s383 = scalar_lea.sflag [#allocation12], %s382
        %s384 = sand.u32 %s190, 1
        %s385 = smul.addr %s384, 8
        %s386 = scalar_lea.vmem [#allocation11], %s385
        %v387 = vld [vmem:[%s313] sm:$0xff]
        %v388 = vmul.f32 %v387, 0.17677669
        %v389 = vld [vmem:[%s322] sm:$0xff]
        %v390 = vld [vmem:[%s322 + $0x8] sm:$0xff]
        %v391 = vld [vmem:[%s331] sm:$0xff]
        %v392 = vld [vmem:[%s331 + $0x8] sm:$0xff]
        %vm393 = vcmask 261120
        %v395 = vsel %vm393, %v388, 0
        %v398 = vsel %vm393, %v389, 0
        %v401 = vsel %vm393, %v390, 0
        %403 = vmatprep.subr.mxu0 0.0
        %404 = vmatpush1.xpose.msra.mxu0 %v398
        %405 = vmatprep.subr.mxu0 0.0
        %406 = vmatpush1.xpose.msra.mxu0 %v401
        %407 = vmatprep.subr.mxu0 0.0
        %408 = vmatpush1.xpose.msra.mxu0 0.0
        %409 = vmatprep.subr.mxu0 0.0
        %410 = vmatpush1.xpose.msra.mxu0 0.0
        %411 = vmatprep.subr.mxu0 0.0
        %412 = vmatpush1.xpose.msra.mxu0 0.0
        %413 = vmatprep.subr.mxu0 0.0
        %414 = vmatpush1.xpose.msra.mxu0 0.0
        %415 = vmatprep.subr.mxu0 0.0
        %416 = vmatpush1.xpose.msra.mxu0 0.0
        %417 = vmatprep.subr.mxu0 0.0
        %418 = vmatpush1.xpose.msra.mxu0 0.0
        %419 = vmatprep.subr.mxu0 0.0
        %420 = vmatpush1.xpose.msra.mxu0 0.0
        %421 = vmatprep.subr.mxu0 0.0
        %422 = vmatpush1.xpose.msra.mxu0 0.0
        %423 = vmatprep.subr.mxu0 0.0
        %424 = vmatpush1.xpose.msra.mxu0 0.0
        %425 = vmatprep.subr.mxu0 0.0
        %426 = vmatpush1.xpose.msra.mxu0 0.0
        %427 = vmatprep.subr.mxu0 0.0
        %428 = vmatpush1.xpose.msra.mxu0 0.0
        %429 = vmatprep.subr.mxu0 0.0
        %430 = vmatpush1.xpose.msra.mxu0 0.0
        %431 = vmatprep.subr.mxu0 0.0
        %432 = vmatpush1.xpose.msra.mxu0 0.0
        %433 = vmatprep.subr.mxu0 0.0
        %434 = vmatpush1.xpose.msra.mxu0 0.0
        %435 = vmatprep.subr.mxu0 0.0
        %436 = vmatpush1.xpose.msra.mxu0 0.0
        %437 = vmatprep.subr.mxu0 0.0
        %438 = vmatpush1.xpose.msra.mxu0 0.0
        %439 = vmatprep.subr.mxu0 0.0
        %440 = vmatpush1.xpose.msra.mxu0 0.0
        %441 = vmatprep.subr.mxu0 0.0
        %442 = vmatpush1.xpose.msra.mxu0 0.0
        %443 = vmatprep.subr.mxu0 0.0
        %444 = vmatpush1.xpose.msra.mxu0 0.0
        %445 = vmatprep.subr.mxu0 0.0
        %446 = vmatpush1.xpose.msra.mxu0 0.0
        %447 = vmatprep.subr.mxu0 0.0
        %448 = vmatpush1.xpose.msra.mxu0 0.0
        %449 = vmatprep.subr.mxu0 0.0
        %450 = vmatpush1.xpose.msra.mxu0 0.0
        %451 = vmatprep.subr.mxu0 0.0
        %452 = vmatpush1.xpose.msra.mxu0 0.0
        %453 = vmatprep.subr.mxu0 0.0
        %454 = vmatpush1.xpose.msra.mxu0 0.0
        %455 = vmatprep.subr.mxu0 0.0
        %456 = vmatpush1.xpose.msra.mxu0 0.0
        %457 = vmatprep.subr.mxu0 0.0
        %458 = vmatpush1.xpose.msra.mxu0 0.0
        %459 = vmatprep.subr.mxu0 0.0
        %460 = vmatpush1.xpose.msra.mxu0 0.0
        %461 = vmatprep.subr.mxu0 0.0
        %462 = vmatpush1.xpose.msra.mxu0 0.0
        %463 = vmatprep.subr.mxu0 0.0
        %464 = vmatpush1.xpose.msra.mxu0 0.0
        %465 = vmatprep.subr.mxu0 0.0
        %466 = vmatpush1.xpose.msra.mxu0 0.0
        %467 = vmatprep.mubr.f32.mxu0 0.0
        %468 = vmatmul.mubr.f32.gmra.mrb[0].mxu0 %v395
        %v469 = vpop.f32.mrb[0].mxu0
        %v470 = vadd.f32 0.0, %v469
        %v471 = vpop.f32.mrb[0].mxu0
        %472 = vdwg.mxu0
        %v473 = vld [vmem:[%s340] sm:$0xff]
        %vm474 = vcmp.ne.s32.totalorder %v473, 0
        %v475 = vsel %vm474, -1000000.0, %v470
        %vm476 = vcmask 130048
        %v477 = vsel %vm476, %v475, -inf
        %478 = vmax.xlane.f32.xlu0 %v477
        %v479 = vpop.xlane.xlu0 %478
        %v480 = vsub.f32 %v475, %v479
        %v481 = vmul.f32 %v480, 1.442695
        %v482 = vpow.pop %v481
        %v483 = vsel %vm476, %v482, 0.0
        %484 = vadd.xlane.f32.xlu0 %v483
        %v485 = vpop.xlane.xlu0 %484
        %v486 = vrcp.pop %v485
        %v487 = vmul.f32 %v482, %v486
        %v489 = vsel %vm476, %v487, 0
        %491 = vmatprep.subr.mxu0 0.0
        %492 = vmatpush1.msra.mxu0 %v391
        %493 = vmatprep.subr.mxu0 0.0
        %494 = vmatpush1.msra.mxu0 %v392
        %495 = vmatprep.subr.mxu0 0.0
        %496 = vmatpush1.msra.mxu0 0.0
        %497 = vmatprep.subr.mxu0 0.0
        %498 = vmatpush1.msra.mxu0 0.0
        %499 = vmatprep.subr.mxu0 0.0
        %500 = vmatpush1.msra.mxu0 0.0
        %501 = vmatprep.subr.mxu0 0.0
        %502 = vmatpush1.msra.mxu0 0.0
        %503 = vmatprep.subr.mxu0 0.0
        %504 = vmatpush1.msra.mxu0 0.0
        %505 = vmatprep.subr.mxu0 0.0
        %506 = vmatpush1.msra.mxu0 0.0
        %507 = vmatprep.subr.mxu0 0.0
        %508 = vmatpush1.msra.mxu0 0.0
        %509 = vmatprep.subr.mxu0 0.0
        %510 = vmatpush1.msra.mxu0 0.0
        %511 = vmatprep.subr.mxu0 0.0
        %512 = vmatpush1.msra.mxu0 0.0
        %513 = vmatprep.subr.mxu0 0.0
        %514 = vmatpush1.msra.mxu0 0.0
        %515 = vmatprep.subr.mxu0 0.0
        %516 = vmatpush1.msra.mxu0 0.0
        %517 = vmatprep.subr.mxu0 0.0
        %518 = vmatpush1.msra.mxu0 0.0
        %519 = vmatprep.subr.mxu0 0.0
        %520 = vmatpush1.msra.mxu0 0.0
        %521 = vmatprep.subr.mxu0 0.0
        %522 = vmatpush1.msra.mxu0 0.0
        %523 = vmatprep.subr.mxu0 0.0
        %524 = vmatpush1.msra.mxu0 0.0
        %525 = vmatprep.subr.mxu0 0.0
        %526 = vmatpush1.msra.mxu0 0.0
        %527 = vmatprep.subr.mxu0 0.0
        %528 = vmatpush1.msra.mxu0 0.0
        %529 = vmatprep.subr.mxu0 0.0
        %530 = vmatpush1.msra.mxu0 0.0
        %531 = vmatprep.subr.mxu0 0.0
        %532 = vmatpush1.msra.mxu0 0.0
        %533 = vmatprep.subr.mxu0 0.0
        %534 = vmatpush1.msra.mxu0 0.0
        %535 = vmatprep.subr.mxu0 0.0
        %536 = vmatpush1.msra.mxu0 0.0
        %537 = vmatprep.subr.mxu0 0.0
        %538 = vmatpush1.msra.mxu0 0.0
        %539 = vmatprep.subr.mxu0 0.0
        %540 = vmatpush1.msra.mxu0 0.0
        %541 = vmatprep.subr.mxu0 0.0
        %542 = vmatpush1.msra.mxu0 0.0
        %543 = vmatprep.subr.mxu0 0.0
        %544 = vmatpush1.msra.mxu0 0.0
        %545 = vmatprep.subr.mxu0 0.0
        %546 = vmatpush1.msra.mxu0 0.0
        %547 = vmatprep.subr.mxu0 0.0
        %548 = vmatpush1.msra.mxu0 0.0
        %549 = vmatprep.subr.mxu0 0.0
        %550 = vmatpush1.msra.mxu0 0.0
        %551 = vmatprep.subr.mxu0 0.0
        %552 = vmatpush1.msra.mxu0 0.0
        %553 = vmatprep.subr.mxu0 0.0
        %554 = vmatpush1.msra.mxu0 0.0
        %555 = vmatprep.mubr.f32.mxu0 0.0
        %556 = vmatmul.mubr.f32.gmra.mrb[0].mxu0 %v489
        %v557 = vpop.f32.mrb[0].mxu0
        %v558 = vadd.f32 0.0, %v557
        %v559 = vpop.f32.mrb[0].mxu0
        %560 = vdwg.mxu0
        %561 = vst.msk [vmem:[%s379] sm:$0xff] %vm393, %v558
        %562 = vst.msk [vmem:[%s386] sm:$0xff] %vm476, %v487
        %s563 = sand.u32 %s162, 1
        %s564 = scalar_lea.sflag [#allocation4], %s563
        %s565 = sand.u32 %s162, 1
        %s566 = smul.addr %s565, 8
        %s567 = scalar_lea.vmem [#allocation10], %s566
        %s568 = sand.u32 %s190, 1
        %s569 = scalar_lea.sflag [#allocation12], %s568
        %s570 = sand.u32 %s190, 1
        %s571 = smul.addr %s570, 8
        %s572 = scalar_lea.vmem [#allocation11], %s571
        // Predicated region
        $region53: #{tpu_custom_call.1} parent=35 // pred_check
          %p573 = pneg %p172
        $region54: #{tpu_custom_call.1} parent=35 // pred_check_branch
          %575 = sbr.rel (%p573) target = $region56
        $region55: #{tpu_custom_call.1} parent=35 // pred_region
          %s577 = ssub.s32 128, 128
          %578 = vsyncadd %s564, %s577
          %s579 = sadd.s32 %s37, %s36
          %s580 = smul.addr %s579, 128
          %s581 = scalar_lea.hbm %s4, %s580
          %s583 = sshll.u32 %s567, 4
          %s584 = int_to_ptr.vmem [resolvable:$true] %s583
          %586 = dma.vmem_to_hbm [thread:$0]  %s584, 128, %s581, %s564
        $region56: #{tpu_custom_call.1} parent=35 // pred_fallthru
          _
        // Predicated region
        $region57: #{tpu_custom_call.1} parent=35 // pred_check
          %p587 = pneg %p200
        $region58: #{tpu_custom_call.1} parent=35 // pred_check_branch
          %589 = sbr.rel (%p587) target = $region60
        $region59: #{tpu_custom_call.1} parent=35 // pred_region
          %s591 = ssub.s32 128, 128
          %592 = vsyncadd %s569, %s591
          %s593 = sadd.s32 %s37, %s36
          %s594 = smul.addr %s593, 128
          %s595 = scalar_lea.hbm %s5, %s594
          %s597 = sshll.u32 %s572, 4
          %s598 = int_to_ptr.vmem [resolvable:$true] %s597
          %600 = dma.vmem_to_hbm [thread:$0]  %s598, 128, %s595, %s569
        $region60: #{tpu_custom_call.1} parent=35 // pred_fallthru
          _
      $region36: #{tpu_custom_call.1} parent=5 // pred_fallthru
        _
      %p601 = scmp.le.s32.totalorder 2, %s27
      // Predicated region
      $region61: #{tpu_custom_call.1} parent=5 // pred_check
        %p602 = pneg %p601
      $region62: #{tpu_custom_call.1} parent=5 // pred_check_branch
        %604 = sbr.rel (%p602) target = $region64
      $region63: #{tpu_custom_call.1} parent=5 // pred_region
        %s605 = ssub.s32 %s27, 2
        // Predicated region
        $region65: #{tpu_custom_call.1} parent=63 // pred_check
          %p606 = pneg %p178
        $region66: #{tpu_custom_call.1} parent=63 // pred_check_branch
          %608 = sbr.rel (%p606) target = $region68
        $region67: #{tpu_custom_call.1} parent=63 // pred_region
          %s609 = sand.u32 %s163, 1
          %s610 = scalar_lea.sflag [#allocation4], %s609
          %s611 = sand.u32 %s163, 1
          %s612 = smul.addr %s611, 8
          %s613 = scalar_lea.vmem [#allocation10], %s612
          %614 = dma.done %s610, 128
        $region68: #{tpu_custom_call.1} parent=63 // pred_fallthru
          _
        // Predicated region
        $region69: #{tpu_custom_call.1} parent=63 // pred_check
          %p615 = pneg %p206
        $region70: #{tpu_custom_call.1} parent=63 // pred_check_branch
          %617 = sbr.rel (%p615) target = $region72
        $region71: #{tpu_custom_call.1} parent=63 // pred_region
          %s618 = sand.u32 %s191, 1
          %s619 = scalar_lea.sflag [#allocation12], %s618
          %s620 = sand.u32 %s191, 1
          %s621 = smul.addr %s620, 8
          %s622 = scalar_lea.vmem [#allocation11], %s621
          %623 = dma.done %s619, 128
        $region72: #{tpu_custom_call.1} parent=63 // pred_fallthru
          _
      $region64: #{tpu_custom_call.1} parent=5 // pred_fallthru
        _
    $region6: #{tpu_custom_call.1} parent=1 // loop_footer
      %s31 = sadd.s32 1, %s27
    $region7: #{tpu_custom_call.1} parent=1 // loop_footer_branch
      %26 = sbr.rel target = $region3
    $region8: #{tpu_custom_call.1} parent=1 // loop_exit
      _
    %624 = vsyncpa [#allocation3], 1
    %s625 = scalar_lea.sflag [#allocation3], 1
    %626 = vsyncpa %s625, 1
    %627 = vsyncpa [#allocation6], 1
    %s628 = scalar_lea.sflag [#allocation6], 1
    %629 = vsyncpa %s628, 1
    %630 = vsyncpa [#allocation9], 1
    %s631 = scalar_lea.sflag [#allocation9], 1
    %632 = vsyncpa %s631, 1
    %633 = vsyncpa [#allocation4], 1
    %s634 = scalar_lea.sflag [#allocation4], 1
    %635 = vsyncpa %s634, 1
    %636 = vsyncpa [#allocation12], 1
    %s637 = scalar_lea.sflag [#allocation12], 1
    %638 = vsyncpa %s637, 1

</llo_original>
